<compile_context>
chip_gen: v6e
topology: v6e:2x2x1
jax: 0.10.0
libtpu: 0.0.40
codegen_flags: <defaults>
</compile_context>

<pallas_src>
import jax
import jax.numpy as jnp
from jax.experimental import pallas as pl
from jax.experimental.pallas import tpu as pltpu

CONFIG = {
    "drop": 0.2,            # Dropout(p) -> identity in inference mode
    "norm": True,           # BatchNorm1d after every Linear
    "dims": [16, 32, 32, 1],
    "activation": "SELU",
}

BN_EPS = 1e-5
SELU_ALPHA = 1.6732632423543772
SELU_SCALE = 1.0507009873554805

_SUB = 16   # sublane padding quantum (covers bf16's (16,128) tiling and f32's (8,128))


def _round_up(x, m):
    return (x + m - 1) // m * m


def _activation(x, name):
    if name == "SELU":
        # exp(x)-1 kept (vs expm1) for guaranteed Mosaic lowering; the reference
        # uses the identical formula so comparisons are consistent.
        return SELU_SCALE * jnp.where(x > 0, x, SELU_ALPHA * (jnp.exp(x) - 1.0))
    elif name == "ReLU":
        return jnp.maximum(x, 0.0)
    raise ValueError(f"unsupported activation {name}")


def _fold_bn(params, norm):
    """Fold inference-mode BatchNorm1d into each Linear (exact algebra).

    Returns per-layer (W_t, b_col): W_t (d_out, d_in), b_col (d_out, 1),
    already transposed for the feature-major kernel layout.
    """
    folded = []
    for p in params:
        w, b = p[0], p[1]                        # (d_in, d_out), (1, d_out)
        if norm:
            gamma, beta, rmean, rvar = p[2], p[3], p[4], p[5]
            scale = gamma * jax.lax.rsqrt(rvar + BN_EPS)   # (1, d_out)
            w = w * scale
            b = (b - rmean) * scale + beta
        folded.append((jnp.transpose(w), jnp.transpose(b)))
    return folded


def _pack_layers(folded, compute_dtype):
    """Pack all BN-folded weights/biases into 2 small VMEM-resident arrays.

    Layer l occupies rows [off_l, off_l + round_up(d_out_l, _SUB)); padded rows
    and columns are zero, so padded matmuls are exact and padded activation
    rows stay exactly 0 (SELU(0) == 0).  Returns (w_pack, b_pack, metas,
    d_in0_pad) where metas[l] = (row offset, padded d_out, padded d_in).
    """
    d_in0 = folded[0][0].shape[1]
    d_in0_pad = _round_up(d_in0, _SUB)

    row_pads = [_round_up(wt.shape[0], _SUB) for wt, _ in folded]
    offs = [0]
    for rp in row_pads[:-1]:
        offs.append(offs[-1] + rp)
    total_rows = sum(row_pads)

    in_pads = [d_in0_pad] + row_pads[:-1]        # padded contraction dim per layer
    w_cols = max(in_pads)

    w_pack = jnp.zeros((total_rows, w_cols), jnp.float32)
    b_pack = jnp.zeros((total_rows, 1), jnp.float32)
    metas = []
    for (wt, bc), off, rp, ip in zip(folded, offs, row_pads, in_pads):
        d_out, d_in = wt.shape
        w_pack = w_pack.at[off:off + d_out, :d_in].set(wt)
        b_pack = b_pack.at[off:off + d_out, :].set(bc)
        metas.append((off, rp, ip))
    return w_pack.astype(compute_dtype), b_pack, tuple(metas), d_in0_pad


def _make_kernel(metas, d_out_last, activation, compute_dtype):
    n_layers = len(metas)

    def kernel(x_ref, w_ref, b_ref, out_ref):
        # TODO(synk): training-mode stochastic Dropout not implemented
        # (inference-mode Dropout is identity).
        h = x_ref[...]                                   # (d_in0_pad, tile_b)
        for l, (off, d_out_pad, d_in_pad) in enumerate(metas):
            w = w_ref[off:off + d_out_pad, :d_in_pad]    # (d_out_pad, d_in_pad)
            b = b_ref[off:off + d_out_pad, :]            # (d_out_pad, 1), f32
            z = jnp.dot(w, h, preferred_element_type=jnp.float32) + b
            h = _activation(z, activation)               # f32, (d_out_pad, tile_b)
            if l + 1 < n_layers:
                h = h.astype(compute_dtype)              # bf16 operands -> native MXU rate
        # Lane-dense store of the real output rows only.
        out_ref[...] = h[:d_out_last, :].astype(out_ref.dtype)

    return kernel


def _choose_tile_b(B, *, max_tile=2048, target_grid=2):
    """Batch tile: multiple of 256 (fills the 2x256 MXU on v6e/v7x, 128-aligned
    for v5e), large enough to amortize per-grid-step overhead, but aiming for
    >= `target_grid` steps so the 'parallel' axis shards across both v7x TCs."""
    tile = _round_up(max(pl.cdiv(B, target_grid), 1), 256)
    return min(max_tile, tile)


def deepsurv_forward(x, params, *, norm=True, activation="SELU",
                     tile_b=None, compute_dtype=jnp.bfloat16):
    """Runs the whole MLP in one Pallas kernel, tiled over the batch.

    Layout is feature-major: x is fed as a lane-dense (d_in, tile_b) block so
    the batch lives on the 128-lane axis and every layer is a straight MXU
    matmul.  BN is folded into the Linears; all folded weights live in two
    packed arrays with constant index_maps (DMA'd once, VMEM-resident across
    grid steps).  MXU operands use `compute_dtype` (bf16 default) with f32
    accumulation; SELU/bias math stays f32 (no bf16 VPU/EUP on v5e).
    """
    B, d_in = x.shape
    folded = _fold_bn(params, norm)
    d_out_last = folded[-1][0].shape[0]
    w_pack, b_pack, metas, d_in0_pad = _pack_layers(folded, compute_dtype)

    if tile_b is None:
        tile_b = _choose_tile_b(B)
    assert tile_b % 256 == 0, "tile_b must be a multiple of 256"
    num_tiles = pl.cdiv(B, tile_b)
    b_pad = num_tiles * tile_b

    # Single relayout: transpose to feature-major and pad (features -> _SUB
    # multiple, batch -> tile multiple); XLA fuses this into one op.
    x_t = jnp.pad(jnp.transpose(x).astype(compute_dtype),
                  ((0, d_in0_pad - d_in), (0, b_pad - B)))

    out_t = pl.pallas_call(
        _make_kernel(metas, d_out_last, activation, compute_dtype),
        out_shape=jax.ShapeDtypeStruct((d_out_last, b_pad), jnp.float32),
        grid=(num_tiles,),
        in_specs=[
            pl.BlockSpec((d_in0_pad, tile_b), lambda i: (0, i)),   # batch-tiled x
            pl.BlockSpec(w_pack.shape, lambda i: (0, 0)),          # VMEM-resident weights
            pl.BlockSpec(b_pack.shape, lambda i: (0, 0)),          # VMEM-resident biases
        ],
        out_specs=pl.BlockSpec((d_out_last, tile_b), lambda i: (0, i)),
        compiler_params=pltpu.CompilerParams(
            dimension_semantics=("parallel",)),   # shards the batch over v7x's 2 TCs
    )(x_t, w_pack, b_pack)

    # Feature-major, batch-padded result -> (B, d_out).
    return jnp.transpose(out_t)[:B]


def init_params(key, dims, norm):
    """Deterministic synthetic parameters (Linear + BatchNorm1d per layer)."""
    params = []
    keys = jax.random.split(key, len(dims) - 1)
    for i, k in enumerate(keys):
        k1, k2, k3, k4, k5, k6 = jax.random.split(k, 6)
        d_in, d_out = dims[i], dims[i + 1]
        w = jax.random.normal(k1, (d_in, d_out), jnp.float32) / jnp.sqrt(d_in)
        b = 0.1 * jax.random.normal(k2, (1, d_out), jnp.float32)
        if norm:
            gamma = 1.0 + 0.1 * jax.random.normal(k3, (1, d_out), jnp.float32)
            beta = 0.1 * jax.random.normal(k4, (1, d_out), jnp.float32)
            rmean = 0.1 * jax.random.normal(k5, (1, d_out), jnp.float32)
            rvar = jax.random.uniform(k6, (1, d_out), jnp.float32, 0.5, 1.5)
            params.append((w, b, gamma, beta, rmean, rvar))
        else:
            params.append((w, b))
    return params


def reference_forward(x, params, *, norm=True, activation="SELU"):
    """Pure-JAX f32 reference (unfolded BN) for correctness checking."""
    y = x.astype(jnp.float32)
    for p in params:
        y = y @ p[0] + p[1]
        if norm:
            gamma, beta, rmean, rvar = p[2], p[3], p[4], p[5]
            y = (y - rmean) * jax.lax.rsqrt(rvar + BN_EPS) * gamma + beta
        y = _activation(y, activation)
    return y


if __name__ == "__main__":
    dims = CONFIG["dims"]
    norm = CONFIG["norm"]
    act = CONFIG["activation"]

    key = jax.random.PRNGKey(0)
    kx, kp = jax.random.split(key)
    B = 1000                                   # exercises a 2-step grid + batch padding
    x = jax.random.normal(kx, (B, dims[0]), jnp.float32)
    params = init_params(kp, dims, norm)

    ref = reference_forward(x, params, norm=norm, activation=act)

    # f32 compute path: tight check of kernel mechanics / BN folding / layout.
    out_f32 = jax.block_until_ready(
        deepsurv_forward(x, params, norm=norm, activation=act,
                         compute_dtype=jnp.float32))
    assert out_f32.shape == (B, dims[-1]), out_f32.shape
    assert jnp.allclose(out_f32, ref, atol=1e-4, rtol=1e-4), "f32 mismatch vs reference"

    # Default fast path: bf16 MXU operands, f32 accumulation/activations.
    out = jax.block_until_ready(
        deepsurv_forward(x, params, norm=norm, activation=act))
    assert out.shape == (B, dims[-1]), out.shape
    assert jnp.allclose(out, ref, atol=5e-2, rtol=5e-2), "bf16 mismatch vs reference"

    print("KERNEL_OK")
</pallas_src>

<mosaic_0001>
module attributes {stable_mosaic.version = 11 : i64} {
  func.func @kernel(%arg0: i32, %arg1: memref<16x512xf32, #tpu.memory_space<vmem>>, %arg2: memref<80x32xf32, #tpu.memory_space<vmem>>, %arg3: memref<80x1xf32, #tpu.memory_space<vmem>>, %arg4: memref<1x512xf32, #tpu.memory_space<vmem>>) attributes {dimension_semantics = [#tpu.dimension_semantics<parallel>], iteration_bounds = array<i64: 2>, scalar_prefetch = 0 : i64, scratch_operands = 0 : i64, tpu.core_type = #tpu.core_type<tc>, window_params = [{transform_indices = @transform_0, window_bounds = array<i64: 16, 512>}, {pipeline_mode = #tpu.pipeline_mode<synchronous>, transform_indices = @transform_1, window_bounds = array<i64: 80, 32>}, {pipeline_mode = #tpu.pipeline_mode<synchronous>, transform_indices = @transform_2, window_bounds = array<i64: 80, 1>}, {transform_indices = @transform_3, window_bounds = array<i64: 1, 512>}]} {
    %c0 = arith.constant 0 : index
    %c0_0 = arith.constant 0 : index
    %0 = vector.load %arg1[%c0, %c0_0] : memref<16x512xf32, #tpu.memory_space<vmem>>, vector<16x512xf32>
    %c0_1 = arith.constant 0 : index
    %c0_2 = arith.constant 0 : index
    %1 = vector.load %arg2[%c0_1, %c0_2] : memref<80x32xf32, #tpu.memory_space<vmem>>, vector<32x16xf32>
    %c0_3 = arith.constant 0 : index
    %c0_4 = arith.constant 0 : index
    %2 = vector.load %arg3[%c0_3, %c0_4] : memref<80x1xf32, #tpu.memory_space<vmem>>, vector<32x1xf32>
    %cst = arith.constant dense<0.000000e+00> : vector<32x512xf32>
    %3 = tpu.matmul %1, %0, %cst {dimension_numbers = #tpu.dot_dimension_numbers<[1], [0], [0], [1], [0, 0, 1, 1], [], []>} : vector<32x16xf32>, vector<16x512xf32>, vector<32x512xf32> -> vector<32x512xf32>
    %4 = vector.broadcast %2 : vector<32x1xf32> to vector<32x512xf32>
    %5 = arith.addf %3, %4 : vector<32x512xf32>
    %cst_5 = arith.constant 0.000000e+00 : f32
    %6 = vector.broadcast %cst_5 : f32 to vector<32x512xf32>
    %7 = arith.cmpf ogt, %5, %6 : vector<32x512xf32>
    %8 = math.exp %5 : vector<32x512xf32>
    %cst_6 = arith.constant 1.000000e+00 : f32
    %9 = vector.broadcast %cst_6 : f32 to vector<32x512xf32>
    %10 = arith.subf %8, %9 : vector<32x512xf32>
    %cst_7 = arith.constant 1.67326319 : f32
    %11 = vector.broadcast %cst_7 : f32 to vector<32x512xf32>
    %12 = arith.mulf %11, %10 : vector<32x512xf32>
    %13 = arith.select %7, %5, %12 : vector<32x512xi1>, vector<32x512xf32>
    %cst_8 = arith.constant 1.05070102 : f32
    %14 = vector.broadcast %cst_8 : f32 to vector<32x512xf32>
    %15 = arith.mulf %14, %13 : vector<32x512xf32>
    %c32 = arith.constant 32 : index
    %c0_9 = arith.constant 0 : index
    %16 = vector.load %arg2[%c32, %c0_9] : memref<80x32xf32, #tpu.memory_space<vmem>>, vector<32x32xf32>
    %c32_10 = arith.constant 32 : index
    %c0_11 = arith.constant 0 : index
    %17 = vector.load %arg3[%c32_10, %c0_11] : memref<80x1xf32, #tpu.memory_space<vmem>>, vector<32x1xf32>
    %cst_12 = arith.constant dense<0.000000e+00> : vector<32x512xf32>
    %18 = tpu.matmul %16, %15, %cst_12 {dimension_numbers = #tpu.dot_dimension_numbers<[1], [0], [0], [1], [0, 0, 1, 1], [], []>} : vector<32x32xf32>, vector<32x512xf32>, vector<32x512xf32> -> vector<32x512xf32>
    %19 = vector.broadcast %17 : vector<32x1xf32> to vector<32x512xf32>
    %20 = arith.addf %18, %19 : vector<32x512xf32>
    %cst_13 = arith.constant 0.000000e+00 : f32
    %21 = vector.broadcast %cst_13 : f32 to vector<32x512xf32>
    %22 = arith.cmpf ogt, %20, %21 : vector<32x512xf32>
    %23 = math.exp %20 : vector<32x512xf32>
    %cst_14 = arith.constant 1.000000e+00 : f32
    %24 = vector.broadcast %cst_14 : f32 to vector<32x512xf32>
    %25 = arith.subf %23, %24 : vector<32x512xf32>
    %cst_15 = arith.constant 1.67326319 : f32
    %26 = vector.broadcast %cst_15 : f32 to vector<32x512xf32>
    %27 = arith.mulf %26, %25 : vector<32x512xf32>
    %28 = arith.select %22, %20, %27 : vector<32x512xi1>, vector<32x512xf32>
    %cst_16 = arith.constant 1.05070102 : f32
    %29 = vector.broadcast %cst_16 : f32 to vector<32x512xf32>
    %30 = arith.mulf %29, %28 : vector<32x512xf32>
    %c64 = arith.constant 64 : index
    %c0_17 = arith.constant 0 : index
    %31 = vector.load %arg2[%c64, %c0_17] : memref<80x32xf32, #tpu.memory_space<vmem>>, vector<16x32xf32>
    %c64_18 = arith.constant 64 : index
    %c0_19 = arith.constant 0 : index
    %32 = vector.load %arg3[%c64_18, %c0_19] : memref<80x1xf32, #tpu.memory_space<vmem>>, vector<16x1xf32>
    %cst_20 = arith.constant dense<0.000000e+00> : vector<16x512xf32>
    %33 = tpu.matmul %31, %30, %cst_20 {dimension_numbers = #tpu.dot_dimension_numbers<[1], [0], [0], [1], [0, 0, 1, 1], [], []>} : vector<16x32xf32>, vector<32x512xf32>, vector<16x512xf32> -> vector<16x512xf32>
    %34 = vector.broadcast %32 : vector<16x1xf32> to vector<16x512xf32>
    %35 = arith.addf %33, %34 : vector<16x512xf32>
    %cst_21 = arith.constant 0.000000e+00 : f32
    %36 = vector.broadcast %cst_21 : f32 to vector<16x512xf32>
    %37 = arith.cmpf ogt, %35, %36 : vector<16x512xf32>
    %38 = math.exp %35 : vector<16x512xf32>
    %cst_22 = arith.constant 1.000000e+00 : f32
    %39 = vector.broadcast %cst_22 : f32 to vector<16x512xf32>
    %40 = arith.subf %38, %39 : vector<16x512xf32>
    %cst_23 = arith.constant 1.67326319 : f32
    %41 = vector.broadcast %cst_23 : f32 to vector<16x512xf32>
    %42 = arith.mulf %41, %40 : vector<16x512xf32>
    %43 = arith.select %37, %35, %42 : vector<16x512xi1>, vector<16x512xf32>
    %cst_24 = arith.constant 1.05070102 : f32
    %44 = vector.broadcast %cst_24 : f32 to vector<16x512xf32>
    %45 = arith.mulf %44, %43 : vector<16x512xf32>
    %46 = vector.extract_strided_slice %45 {offsets = [0, 0], sizes = [1, 512], strides = [1, 1]} : vector<16x512xf32> to vector<1x512xf32>
    %c0_25 = arith.constant 0 : index
    %c0_26 = arith.constant 0 : index
    %47 = vector.load %arg4[%c0_25, %c0_26] : memref<1x512xf32, #tpu.memory_space<vmem>>, vector<1x512xf32>
    tpu.vector_store %arg4[%c0_25, %c0_26], %46 {strides = array<i32>} : memref<1x512xf32, #tpu.memory_space<vmem>>, vector<1x512xf32>,
    return
  }
  func.func @transform_0(%arg0: i32) -> (i32, i32) {
    %c0_i32 = arith.constant 0 : i32
    %c0_i32_0 = arith.constant 0 : i32
    return %c0_i32, %arg0 : i32, i32
  }
  func.func @transform_1(%arg0: i32) -> (i32, i32) {
    %c0_i32 = arith.constant 0 : i32
    %c0_i32_0 = arith.constant 0 : i32
    %c0_i32_1 = arith.constant 0 : i32
    return %c0_i32, %c0_i32_0 : i32, i32
  }
  func.func @transform_2(%arg0: i32) -> (i32, i32) {
    %c0_i32 = arith.constant 0 : i32
    %c0_i32_0 = arith.constant 0 : i32
    %c0_i32_1 = arith.constant 0 : i32
    return %c0_i32, %c0_i32_0 : i32, i32
  }
  func.func @transform_3(%arg0: i32) -> (i32, i32) {
    %c0_i32 = arith.constant 0 : i32
    %c0_i32_0 = arith.constant 0 : i32
    return %c0_i32, %arg0 : i32, i32
  }
}

</mosaic_0001>

<llo_original>
// kernel: tpu_custom_call.1
$region0: #{tpu_custom_call.1}
  #allocation0 [shape = 'u32[]', space=smem, size = 0x4, offset = 0x4, fixed_abs, tag = 'smem constant byte address 0x4 - core index']
  #allocation1 [shape = 'u32[144,128]{1,0:T(1,128)}', space=vmem, size = 0x12000, scoped, tag = 'internal scratch']
  %s0 = inlined_call_operand.vmem [shape: f32[16,1024], index: 0, kind: input, shape index: {}]
  %s1 = inlined_call_operand.vmem [shape: f32[80,32], index: 1, kind: input, shape index: {}]
  %s2 = inlined_call_operand.vmem [shape: f32[80,1], index: 2, kind: input, shape index: {}]
  %s3 = inlined_call_operand.hbm [shape: f32[1,1024], index: 3, kind: output, shape index: {}]
  %s4 = sld [smem:[#allocation0]]
  $region68: #{tpu_custom_call.1} parent=0
    _
  %s6 = ssub.s32 1, %s4
  %s7 = scalar_select 0, %s6, %s4
  $region1: #{tpu_custom_call.1} parent=0
    #allocation2 [shape = 'u8[65536]{0}', space=vmem, size = 0x10000, scoped, tag = 'input window, operand 0']
    #allocation3 [shape = 'u8[4096]{0}', space=vmem, size = 0x1000, scoped, tag = 'output window, operand 0']
    #allocation4 [shape = 's32[2]{0}', space=sflag, size = 0x8, scoped, tag = 'scoped memory for tpu_custom_call.1']
    %8 = vsyncpa [#allocation4], 0
    %s9 = scalar_lea.sflag [#allocation4], 1
    %10 = vsyncpa %s9, 0
    loop: start=0, step=1, limit=4
    $region2: #{tpu_custom_call.1} parent=1 // loop_pre_header
      _
    $region3: #{tpu_custom_call.1} parent=1 // loop_header
      %s12 = sphi 0, %s16
      %p13 = scmp.ge.s32.totalorder %s12, 4
      %s22 = sphi 0, %s24
      %s25 = sphi 0, %s22
      %s26 = sphi 0, %s25
      %s42 = sphi 0, %s26
      %s46 = sphi 0, %s46
      %s48 = sphi 0, %s46
      %s49 = sphi 0, %s48
      %s63 = sphi 0, %s49
      %s67 = sphi 0, %s67
      %s69 = sphi 0, %s67
      %s70 = sphi 0, %s69
      %s84 = sphi 0, %s70
      %s90 = sphi 0, %s92
      %s93 = sphi 0, %s90
      %s94 = sphi 0, %s93
      %s110 = sphi 0, %s94
    $region4: #{tpu_custom_call.1} parent=1 // loop_header_branch
      %15 = sbr.rel (%p13) target = $region8
    $region5: #{tpu_custom_call.1} parent=1 // loop_body
      %s17 = ssub.s32 %s12, 1
      %s18 = ssub.s32 %s12, 2
      %s19 = sadd.s32 %s12, 1
      %s20 = ssub.s32 %s12, %s19
      %p21 = scmp.eq.s32.totalorder %s20, 0
      %s23 = sadd.s32 %s22, 1
      %s24 = scalar_select %p21, %s22, %s23
      %p27 = pneg %p21
      %p28 = scmp.eq.s32.totalorder %s12, 1
      %p29 = por %p27, %p28
      %p30 = scmp.ne.s32.totalorder %s22, %s25
      %p31 = scmp.eq.s32.totalorder %s12, 0
      %p32 = por %p30, %p31
      %p33 = scmp.ne.s32.totalorder %s22, %s25
      %p34 = scmp.eq.s32.totalorder %s17, 1
      %p35 = por %p33, %p34
      %p36 = scmp.ne.s32.totalorder %s25, %s26
      %p37 = scmp.eq.s32.totalorder %s17, 0
      %p38 = por %p36, %p37
      %p39 = scmp.ne.s32.totalorder %s25, %s26
      %p40 = scmp.eq.s32.totalorder %s18, 1
      %p41 = por %p39, %p40
      %p43 = scmp.ne.s32.totalorder %s26, %s42
      %p44 = scmp.eq.s32.totalorder %s18, 0
      %p45 = por %p43, %p44
      %s47 = sadd.s32 %s46, 1
      %p50 = scmp.eq.s32.totalorder %s12, 1
      %p51 = scmp.ne.s32.totalorder %s46, %s48
      %p52 = scmp.eq.s32.totalorder %s12, 0
      %p53 = por %p51, %p52
      %p54 = scmp.ne.s32.totalorder %s46, %s48
      %p55 = scmp.eq.s32.totalorder %s17, 1
      %p56 = por %p54, %p55
      %p57 = scmp.ne.s32.totalorder %s48, %s49
      %p58 = scmp.eq.s32.totalorder %s17, 0
      %p59 = por %p57, %p58
      %p60 = scmp.ne.s32.totalorder %s48, %s49
      %p61 = scmp.eq.s32.totalorder %s18, 1
      %p62 = por %p60, %p61
      %p64 = scmp.ne.s32.totalorder %s49, %s63
      %p65 = scmp.eq.s32.totalorder %s18, 0
      %p66 = por %p64, %p65
      %s68 = sadd.s32 %s67, 1
      %p71 = scmp.eq.s32.totalorder %s12, 1
      %p72 = scmp.ne.s32.totalorder %s67, %s69
      %p73 = scmp.eq.s32.totalorder %s12, 0
      %p74 = por %p72, %p73
      %p75 = scmp.ne.s32.totalorder %s67, %s69
      %p76 = scmp.eq.s32.totalorder %s17, 1
      %p77 = por %p75, %p76
      %p78 = scmp.ne.s32.totalorder %s69, %s70
      %p79 = scmp.eq.s32.totalorder %s17, 0
      %p80 = por %p78, %p79
      %p81 = scmp.ne.s32.totalorder %s69, %s70
      %p82 = scmp.eq.s32.totalorder %s18, 1
      %p83 = por %p81, %p82
      %p85 = scmp.ne.s32.totalorder %s70, %s84
      %p86 = scmp.eq.s32.totalorder %s18, 0
      %p87 = por %p85, %p86
      %s88 = ssub.s32 %s12, %s19
      %p89 = scmp.eq.s32.totalorder %s88, 0
      %s91 = sadd.s32 %s90, 1
      %s92 = scalar_select %p89, %s90, %s91
      %p95 = pneg %p89
      %p96 = scmp.eq.s32.totalorder %s12, 1
      %p97 = por %p95, %p96
      %p98 = scmp.ne.s32.totalorder %s90, %s93
      %p99 = scmp.eq.s32.totalorder %s12, 0
      %p100 = por %p98, %p99
      %p101 = scmp.ne.s32.totalorder %s90, %s93
      %p102 = scmp.eq.s32.totalorder %s17, 1
      %p103 = por %p101, %p102
      %p104 = scmp.ne.s32.totalorder %s93, %s94
      %p105 = scmp.eq.s32.totalorder %s17, 0
      %p106 = por %p104, %p105
      %p107 = scmp.ne.s32.totalorder %s93, %s94
      %p108 = scmp.eq.s32.totalorder %s18, 1
      %p109 = por %p107, %p108
      %p111 = scmp.ne.s32.totalorder %s94, %s110
      %p112 = scmp.eq.s32.totalorder %s18, 0
      %p113 = por %p111, %p112
      %p114 = scmp.le.s32.totalorder 1, %s12
      %p115 = scmp.lt.s32.totalorder %s12, 3
      %p116 = pnand %p114, %p115
      %p117 = pneg %p116
      // Predicated region
      $region9: #{tpu_custom_call.1} parent=5 // pred_check
        _
      $region10: #{tpu_custom_call.1} parent=5 // pred_check_branch
        %119 = sbr.rel (%p116) target = $region12
      $region11: #{tpu_custom_call.1} parent=5 // pred_region
        %s120 = ssub.s32 %s12, 1
        // Predicated region
        $region13: #{tpu_custom_call.1} parent=11 // pred_check
          %p121 = pneg %p59
        $region14: #{tpu_custom_call.1} parent=11 // pred_check_branch
          %123 = sbr.rel (%p121) target = $region16
        $region15: #{tpu_custom_call.1} parent=11 // pred_region
          _
        $region16: #{tpu_custom_call.1} parent=11 // pred_fallthru
          _
        // Predicated region
        $region17: #{tpu_custom_call.1} parent=11 // pred_check
          %p124 = pneg %p80
        $region18: #{tpu_custom_call.1} parent=11 // pred_check_branch
          %126 = sbr.rel (%p124) target = $region20
        $region19: #{tpu_custom_call.1} parent=11 // pred_region
          _
        $region20: #{tpu_custom_call.1} parent=11 // pred_fallthru
          _
      $region12: #{tpu_custom_call.1} parent=5 // pred_fallthru
        _
      %p127 = scmp.lt.s32.totalorder %s12, 2
      // Predicated region
      $region21: #{tpu_custom_call.1} parent=5 // pred_check
        %p128 = pneg %p127
      $region22: #{tpu_custom_call.1} parent=5 // pred_check_branch
        %130 = sbr.rel (%p128) target = $region24
      $region23: #{tpu_custom_call.1} parent=5 // pred_region
        // Predicated region
        $region25: #{tpu_custom_call.1} parent=23 // pred_check
          %p131 = pneg %p32
        $region26: #{tpu_custom_call.1} parent=23 // pred_check_branch
          %133 = sbr.rel (%p131) target = $region28
        $region27: #{tpu_custom_call.1} parent=23 // pred_region
          %s134 = sand.u32 %s22, 1
          %s135 = sand.u32 %s22, 1
          %s136 = smul.addr %s135, 64
          %s137 = scalar_lea.vmem [#allocation2], %s136
          %s138 = smul.u32 4, %s12
          %s139 = smul.addr %s138, 8
          %s140 = scalar_lea.vmem %s0, %s139
          // Predicated region
          $region29: #{tpu_custom_call.1} parent=27 // pred_check
            _
          $region30: #{tpu_custom_call.1} parent=27 // pred_check_branch
            %142 = sbr.rel (0) target = $region32
          $region31: #{tpu_custom_call.1} parent=27 // pred_region
            // Predicated region
            $region33: #{tpu_custom_call.1} parent=31 // pred_check
              _
            $region34: #{tpu_custom_call.1} parent=31 // pred_check_branch
              %144 = sbr.rel (0) target = $region36
            $region35: #{tpu_custom_call.1} parent=31 // pred_region
              loop: start=0, step=1, limit=1
              $region37: #{tpu_custom_call.1} parent=35 // loop_pre_header
                _
              $region38: #{tpu_custom_call.1} parent=35 // loop_header
                %s146 = sphi 0, %s150
                %p147 = scmp.ge.s32.totalorder %s146, 1
                %s151 = sphi %s140, %s140
                %s152 = sphi %s137, %s137
              $region39: #{tpu_custom_call.1} parent=35 // loop_header_branch
                %149 = sbr.rel (%p147) target = $region43
              $region40: #{tpu_custom_call.1} parent=35 // loop_body
                %v153 = vld [vmem:[%s151] sm:$0xff]
                %154 = vst [vmem:[%s152] sm:$0xff] %v153
                %v155 = vld [vmem:[%s151 + $0x8] sm:$0xff]
                %156 = vst [vmem:[%s152 + $0x8] sm:$0xff] %v155
                %v157 = vld [vmem:[%s151 + $0x10] sm:$0xff]
                %158 = vst [vmem:[%s152 + $0x10] sm:$0xff] %v157
                %v159 = vld [vmem:[%s151 + $0x18] sm:$0xff]
                %160 = vst [vmem:[%s152 + $0x18] sm:$0xff] %v159
                %v161 = vld [vmem:[%s151 + $0x40] sm:$0xff]
                %162 = vst [vmem:[%s152 + $0x20] sm:$0xff] %v161
                %v163 = vld [vmem:[%s151 + $0x48] sm:$0xff]
                %164 = vst [vmem:[%s152 + $0x28] sm:$0xff] %v163
                %v165 = vld [vmem:[%s151 + $0x50] sm:$0xff]
                %166 = vst [vmem:[%s152 + $0x30] sm:$0xff] %v165
                %v167 = vld [vmem:[%s151 + $0x58] sm:$0xff]
                %168 = vst [vmem:[%s152 + $0x38] sm:$0xff] %v167
              $region41: #{tpu_custom_call.1} parent=35 // loop_footer
                %s150 = sadd.s32 1, %s146
              $region42: #{tpu_custom_call.1} parent=35 // loop_footer_branch
                %145 = sbr.rel target = $region38
              $region43: #{tpu_custom_call.1} parent=35 // loop_exit
                _
            $region36: #{tpu_custom_call.1} parent=31 // pred_fallthru
              _
            // Predicated region
            $region44: #{tpu_custom_call.1} parent=31 // pred_check
              _
            $region45: #{tpu_custom_call.1} parent=31 // pred_check_branch
              %170 = sbr.rel target = $region47
            $region46: #{tpu_custom_call.1} parent=31 // pred_region
              _
            $region47: #{tpu_custom_call.1} parent=31 // pred_fallthru
              _
          $region32: #{tpu_custom_call.1} parent=27 // pred_fallthru
            _
          %171 = vnop
        $region28: #{tpu_custom_call.1} parent=23 // pred_fallthru
          _
      $region24: #{tpu_custom_call.1} parent=5 // pred_fallthru
        _
      %p172 = scmp.le.s32.totalorder 1, %s12
      %p173 = scmp.lt.s32.totalorder %s12, 3
      %p174 = pnand %p172, %p173
      %p175 = pneg %p174
      // Predicated region
      $region48: #{tpu_custom_call.1} parent=5 // pred_check
        _
      $region49: #{tpu_custom_call.1} parent=5 // pred_check_branch
        %177 = sbr.rel (%p174) target = $region51
      $region50: #{tpu_custom_call.1} parent=5 // pred_region
        %s178 = ssub.s32 %s12, 1
        %s179 = sand.u32 %s25, 1
        %s180 = sand.u32 %s25, 1
        %s181 = smul.addr %s180, 64
        %s182 = scalar_lea.vmem [#allocation2], %s181
        // Predicated region
        $region52: #{tpu_custom_call.1} parent=50 // pred_check
          %p183 = pneg %p38
        $region53: #{tpu_custom_call.1} parent=50 // pred_check_branch
          %185 = sbr.rel (%p183) target = $region55
        $region54: #{tpu_custom_call.1} parent=50 // pred_region
          _
        $region55: #{tpu_custom_call.1} parent=50 // pred_fallthru
          _
        %s186 = sand.u32 %s25, 1
        %s187 = sand.u32 %s25, 1
        %s188 = smul.addr %s187, 64
        %s189 = scalar_lea.vmem [#allocation2], %s188
        %p190 = pneg %p38
        %p191 = pneg %p35
        %p192 = pneg %p59
        %p193 = pneg %p56
        %p194 = pneg %p80
        %p195 = pneg %p77
        %p196 = pneg %p106
        %p197 = pneg %p103
        %s198 = sand.u32 %s93, 1
        %s199 = scalar_lea.sflag [#allocation4], %s198
        %s200 = sand.u32 %s93, 1
        %s201 = smul.addr %s200, 4
        %s202 = scalar_lea.vmem [#allocation3], %s201
        %s203 = smul.u32 4, %s17
        %s204 = smul.u32 4, %s17
        %v205 = vld [vmem:[%s182] sm:$0xff]
        %v206 = vld [vmem:[%s182 + $0x8] sm:$0xff]
        %v207 = vld [vmem:[%s182 + $0x10] sm:$0xff]
        %v208 = vld [vmem:[%s182 + $0x18] sm:$0xff]
        %v209 = vld [vmem:[%s182 + $0x20] sm:$0xff]
        %v210 = vld [vmem:[%s182 + $0x28] sm:$0xff]
        %v211 = vld [vmem:[%s182 + $0x30] sm:$0xff]
        %v212 = vld [vmem:[%s182 + $0x38] sm:$0xff]
        %v213 = vld [vmem:[%s1] sm:$0xff]
        %v214 = vld [vmem:[%s1 + $0x8] sm:$0xff]
        %v215 = vld [vmem:[%s1 + $0x10] sm:$0xff]
        %v216 = vld [vmem:[%s1 + $0x18] sm:$0xff]
        %v217 = vld [vmem:[%s2] sm:$0xff]
        %v218 = vld [vmem:[%s2 + $0x8] sm:$0xff]
        %v219 = vld [vmem:[%s2 + $0x10] sm:$0xff]
        %v220 = vld [vmem:[%s2 + $0x18] sm:$0xff]
        %222 = vset.pattern.permute.xlu0 0
        %223 = vperm.xlu0 %222, %v217
        %v224 = vpop.permute.xlu0 %223
        %227 = vset.pattern.permute.xlu0 0
        %228 = vperm.xlu0 %227, %v218
        %v229 = vpop.permute.xlu0 %228
        %232 = vset.pattern.permute.xlu0 0
        %233 = vperm.xlu0 %232, %v219
        %v234 = vpop.permute.xlu0 %233
        %237 = vset.pattern.permute.xlu0 0
        %238 = vperm.xlu0 %237, %v220
        %v239 = vpop.permute.xlu0 %238
        %vm241 = vcmask 130048
        %v243 = vsel %vm241, %v213, 0
        %v246 = vsel %vm241, %v214, 0
        %v249 = vsel %vm241, %v215, 0
        %v252 = vsel %vm241, %v216, 0
        %254 = vmatprep.subr.mxu0 0.0
        %255 = vmatpush1.msra.mxu0 0.0
        %256 = vmatprep.subr.mxu0 0.0
        %257 = vmatpush1.msra.mxu0 0.0
        %258 = vmatprep.subr.mxu0 0.0
        %259 = vmatpush1.msra.mxu0 0.0
        %260 = vmatprep.subr.mxu0 0.0
        %261 = vmatpush1.msra.mxu0 0.0
        %262 = vmatprep.subr.mxu0 0.0
        %263 = vmatpush1.msra.mxu0 0.0
        %264 = vmatprep.subr.mxu0 0.0
        %265 = vmatpush1.msra.mxu0 0.0
        %266 = vmatprep.subr.mxu0 0.0
        %267 = vmatpush1.msra.mxu0 0.0
        %268 = vmatprep.subr.mxu0 0.0
        %269 = vmatpush1.msra.mxu0 0.0
        %270 = vmatprep.subr.mxu0 0.0
        %271 = vmatpush1.msra.mxu0 0.0
        %272 = vmatprep.subr.mxu0 0.0
        %273 = vmatpush1.msra.mxu0 0.0
        %274 = vmatprep.subr.mxu0 0.0
        %275 = vmatpush1.msra.mxu0 0.0
        %276 = vmatprep.subr.mxu0 0.0
        %277 = vmatpush1.msra.mxu0 0.0
        %278 = vmatprep.subr.mxu0 0.0
        %279 = vmatpush1.msra.mxu0 0.0
        %280 = vmatprep.subr.mxu0 0.0
        %281 = vmatpush1.msra.mxu0 0.0
        %282 = vmatprep.subr.mxu0 %v210
        %283 = vmatpush1.msra.mxu0 %v209
        %284 = vmatprep.subr.mxu0 %v206
        %285 = vmatpush1.msra.mxu0 %v205
        %286 = vmatprep.subr.mxu0 0.0
        %287 = vmatpush2.msra.mxu0 0.0
        %288 = vmatprep.subr.mxu0 0.0
        %289 = vmatpush2.msra.mxu0 0.0
        %290 = vmatprep.subr.mxu0 0.0
        %291 = vmatpush2.msra.mxu0 0.0
        %292 = vmatprep.subr.mxu0 0.0
        %293 = vmatpush2.msra.mxu0 0.0
        %294 = vmatprep.subr.mxu0 0.0
        %295 = vmatpush2.msra.mxu0 0.0
        %296 = vmatprep.subr.mxu0 0.0
        %297 = vmatpush2.msra.mxu0 0.0
        %298 = vmatprep.subr.mxu0 0.0
        %299 = vmatpush2.msra.mxu0 0.0
        %300 = vmatprep.subr.mxu0 0.0
        %301 = vmatpush2.msra.mxu0 0.0
        %302 = vmatprep.subr.mxu0 0.0
        %303 = vmatpush2.msra.mxu0 0.0
        %304 = vmatprep.subr.mxu0 0.0
        %305 = vmatpush2.msra.mxu0 0.0
        %306 = vmatprep.subr.mxu0 0.0
        %307 = vmatpush2.msra.mxu0 0.0
        %308 = vmatprep.subr.mxu0 0.0
        %309 = vmatpush2.msra.mxu0 0.0
        %310 = vmatprep.subr.mxu0 0.0
        %311 = vmatpush2.msra.mxu0 0.0
        %312 = vmatprep.subr.mxu0 0.0
        %313 = vmatpush2.msra.mxu0 0.0
        %314 = vmatprep.subr.mxu0 0.0
        %315 = vmatpush2.msra.mxu0 0.0
        %316 = vmatprep.subr.mxu0 0.0
        %317 = vmatpush2.msra.mxu0 0.0
        %318 = vmatprep.mubr.f32.mxu0 0.0
        %319 = vmatmul.mubr.f32.gmra.mxu0 %v243
        %v320 = vpop.f32.mrf.mxu0
        %v321 = vadd.f32 %v224, %v320
        %v322 = vpop.f32.mrf.mxu0
        %v323 = vadd.f32 %v224, %v322
        %324 = vmatprep.mubr.f32.mxu0 0.0
        %325 = vmatmul.mubr.f32.gmra.mxu0 %v246
        %v326 = vpop.f32.mrf.mxu0
        %v327 = vadd.f32 %v229, %v326
        %v328 = vpop.f32.mrf.mxu0
        %v329 = vadd.f32 %v229, %v328
        %330 = vmatprep.mubr.f32.mxu0 0.0
        %331 = vmatmul.mubr.f32.gmra.mxu0 %v249
        %v332 = vpop.f32.mrf.mxu0
        %v333 = vadd.f32 %v234, %v332
        %v334 = vpop.f32.mrf.mxu0
        %v335 = vadd.f32 %v234, %v334
        %336 = vmatprep.mubr.f32.mxu0 0.0
        %337 = vmatmul.mubr.f32.gmra.mxu0 %v252
        %v338 = vpop.f32.mrf.mxu0
        %v339 = vadd.f32 %v239, %v338
        %v340 = vpop.f32.mrf.mxu0
        %v341 = vadd.f32 %v239, %v340
        %342 = vdwg.mxu0
        %343 = vmatprep.subr.mxu0 0.0
        %344 = vmatpush1.msra.mxu0 0.0
        %345 = vmatprep.subr.mxu0 0.0
        %346 = vmatpush1.msra.mxu0 0.0
        %347 = vmatprep.subr.mxu0 0.0
        %348 = vmatpush1.msra.mxu0 0.0
        %349 = vmatprep.subr.mxu0 0.0
        %350 = vmatpush1.msra.mxu0 0.0
        %351 = vmatprep.subr.mxu0 0.0
        %352 = vmatpush1.msra.mxu0 0.0
        %353 = vmatprep.subr.mxu0 0.0
        %354 = vmatpush1.msra.mxu0 0.0
        %355 = vmatprep.subr.mxu0 0.0
        %356 = vmatpush1.msra.mxu0 0.0
        %357 = vmatprep.subr.mxu0 0.0
        %358 = vmatpush1.msra.mxu0 0.0
        %359 = vmatprep.subr.mxu0 0.0
        %360 = vmatpush1.msra.mxu0 0.0
        %361 = vmatprep.subr.mxu0 0.0
        %362 = vmatpush1.msra.mxu0 0.0
        %363 = vmatprep.subr.mxu0 0.0
        %364 = vmatpush1.msra.mxu0 0.0
        %365 = vmatprep.subr.mxu0 0.0
        %366 = vmatpush1.msra.mxu0 0.0
        %367 = vmatprep.subr.mxu0 0.0
        %368 = vmatpush1.msra.mxu0 0.0
        %369 = vmatprep.subr.mxu0 0.0
        %370 = vmatpush1.msra.mxu0 0.0
        %371 = vmatprep.subr.mxu0 %v212
        %372 = vmatpush1.msra.mxu0 %v211
        %373 = vmatprep.subr.mxu0 %v208
        %374 = vmatpush1.msra.mxu0 %v207
        %375 = vmatprep.subr.mxu0 0.0
        %376 = vmatpush2.msra.mxu0 0.0
        %377 = vmatprep.subr.mxu0 0.0
        %378 = vmatpush2.msra.mxu0 0.0
        %379 = vmatprep.subr.mxu0 0.0
        %380 = vmatpush2.msra.mxu0 0.0
        %381 = vmatprep.subr.mxu0 0.0
        %382 = vmatpush2.msra.mxu0 0.0
        %383 = vmatprep.subr.mxu0 0.0
        %384 = vmatpush2.msra.mxu0 0.0
        %385 = vmatprep.subr.mxu0 0.0
        %386 = vmatpush2.msra.mxu0 0.0
        %387 = vmatprep.subr.mxu0 0.0
        %388 = vmatpush2.msra.mxu0 0.0
        %389 = vmatprep.subr.mxu0 0.0
        %390 = vmatpush2.msra.mxu0 0.0
        %391 = vmatprep.subr.mxu0 0.0
        %392 = vmatpush2.msra.mxu0 0.0
        %393 = vmatprep.subr.mxu0 0.0
        %394 = vmatpush2.msra.mxu0 0.0
        %395 = vmatprep.subr.mxu0 0.0
        %396 = vmatpush2.msra.mxu0 0.0
        %397 = vmatprep.subr.mxu0 0.0
        %398 = vmatpush2.msra.mxu0 0.0
        %399 = vmatprep.subr.mxu0 0.0
        %400 = vmatpush2.msra.mxu0 0.0
        %401 = vmatprep.subr.mxu0 0.0
        %402 = vmatpush2.msra.mxu0 0.0
        %403 = vmatprep.subr.mxu0 0.0
        %404 = vmatpush2.msra.mxu0 0.0
        %405 = vmatprep.subr.mxu0 0.0
        %406 = vmatpush2.msra.mxu0 0.0
        %407 = vmatprep.mubr.f32.mxu0 0.0
        %408 = vmatmul.mubr.f32.gmra.mxu0 %v243
        %v409 = vpop.f32.mrf.mxu0
        %v410 = vadd.f32 %v224, %v409
        %v411 = vpop.f32.mrf.mxu0
        %v412 = vadd.f32 %v224, %v411
        %413 = vmatprep.mubr.f32.mxu0 0.0
        %414 = vmatmul.mubr.f32.gmra.mxu0 %v246
        %v415 = vpop.f32.mrf.mxu0
        %v416 = vadd.f32 %v229, %v415
        %v417 = vpop.f32.mrf.mxu0
        %v418 = vadd.f32 %v229, %v417
        %419 = vmatprep.mubr.f32.mxu0 0.0
        %420 = vmatmul.mubr.f32.gmra.mxu0 %v249
        %v421 = vpop.f32.mrf.mxu0
        %v422 = vadd.f32 %v234, %v421
        %v423 = vpop.f32.mrf.mxu0
        %v424 = vadd.f32 %v234, %v423
        %425 = vmatprep.mubr.f32.mxu0 0.0
        %426 = vmatmul.mubr.f32.gmra.mxu0 %v252
        %v427 = vpop.f32.mrf.mxu0
        %v428 = vadd.f32 %v239, %v427
        %v429 = vpop.f32.mrf.mxu0
        %v430 = vadd.f32 %v239, %v429
        %431 = vdwg.mxu0
        %vm432 = vcmp.gt.f32.partialorder %v321, 0.0
        %vm433 = vcmp.gt.f32.partialorder %v323, 0.0
        %vm434 = vcmp.gt.f32.partialorder %v410, 0.0
        %vm435 = vcmp.gt.f32.partialorder %v412, 0.0
        %vm436 = vcmp.gt.f32.partialorder %v327, 0.0
        %vm437 = vcmp.gt.f32.partialorder %v329, 0.0
        %vm438 = vcmp.gt.f32.partialorder %v416, 0.0
        %vm439 = vcmp.gt.f32.partialorder %v418, 0.0
        %vm440 = vcmp.gt.f32.partialorder %v333, 0.0
        %vm441 = vcmp.gt.f32.partialorder %v335, 0.0
        %vm442 = vcmp.gt.f32.partialorder %v422, 0.0
        %vm443 = vcmp.gt.f32.partialorder %v424, 0.0
        %vm444 = vcmp.gt.f32.partialorder %v339, 0.0
        %vm445 = vcmp.gt.f32.partialorder %v341, 0.0
        %vm446 = vcmp.gt.f32.partialorder %v428, 0.0
        %vm447 = vcmp.gt.f32.partialorder %v430, 0.0
        %v448 = vmul.f32 %v321, 1.442695
        %v449 = vpow.pop %v448
        %v450 = vmul.f32 %v323, 1.442695
        %v451 = vpow.pop %v450
        %v452 = vmul.f32 %v410, 1.442695
        %v453 = vpow.pop %v452
        %v454 = vmul.f32 %v412, 1.442695
        %v455 = vpow.pop %v454
        %v456 = vmul.f32 %v327, 1.442695
        %v457 = vpow.pop %v456
        %v458 = vmul.f32 %v329, 1.442695
        %v459 = vpow.pop %v458
        %v460 = vmul.f32 %v416, 1.442695
        %v461 = vpow.pop %v460
        %v462 = vmul.f32 %v418, 1.442695
        %v463 = vpow.pop %v462
        %v464 = vmul.f32 %v333, 1.442695
        %v465 = vpow.pop %v464
        %v466 = vmul.f32 %v335, 1.442695
        %v467 = vpow.pop %v466
        %v468 = vmul.f32 %v422, 1.442695
        %v469 = vpow.pop %v468
        %v470 = vmul.f32 %v424, 1.442695
        %v471 = vpow.pop %v470
        %v472 = vmul.f32 %v339, 1.442695
        %v473 = vpow.pop %v472
        %v474 = vmul.f32 %v341, 1.442695
        %v475 = vpow.pop %v474
        %v476 = vmul.f32 %v428, 1.442695
        %v477 = vpow.pop %v476
        %v478 = vmul.f32 %v430, 1.442695
        %v479 = vpow.pop %v478
        %v480 = vsub.f32 %v449, 1.0
        %v481 = vsub.f32 %v451, 1.0
        %v482 = vsub.f32 %v453, 1.0
        %v483 = vsub.f32 %v455, 1.0
        %v484 = vsub.f32 %v457, 1.0
        %v485 = vsub.f32 %v459, 1.0
        %v486 = vsub.f32 %v461, 1.0
        %v487 = vsub.f32 %v463, 1.0
        %v488 = vsub.f32 %v465, 1.0
        %v489 = vsub.f32 %v467, 1.0
        %v490 = vsub.f32 %v469, 1.0
        %v491 = vsub.f32 %v471, 1.0
        %v492 = vsub.f32 %v473, 1.0
        %v493 = vsub.f32 %v475, 1.0
        %v494 = vsub.f32 %v477, 1.0
        %v495 = vsub.f32 %v479, 1.0
        %v496 = vmul.f32 %v480, 1.6732632
        %v497 = vmul.f32 %v481, 1.6732632
        %v498 = vmul.f32 %v482, 1.6732632
        %v499 = vmul.f32 %v483, 1.6732632
        %v500 = vmul.f32 %v484, 1.6732632
        %v501 = vmul.f32 %v485, 1.6732632
        %v502 = vmul.f32 %v486, 1.6732632
        %v503 = vmul.f32 %v487, 1.6732632
        %v504 = vmul.f32 %v488, 1.6732632
        %v505 = vmul.f32 %v489, 1.6732632
        %v506 = vmul.f32 %v490, 1.6732632
        %v507 = vmul.f32 %v491, 1.6732632
        %v508 = vmul.f32 %v492, 1.6732632
        %v509 = vmul.f32 %v493, 1.6732632
        %v510 = vmul.f32 %v494, 1.6732632
        %v511 = vmul.f32 %v495, 1.6732632
        %v512 = vsel %vm432, %v321, %v496
        %v513 = vsel %vm433, %v323, %v497
        %v514 = vsel %vm434, %v410, %v498
        %v515 = vsel %vm435, %v412, %v499
        %v516 = vsel %vm436, %v327, %v500
        %v517 = vsel %vm437, %v329, %v501
        %v518 = vsel %vm438, %v416, %v502
        %v519 = vsel %vm439, %v418, %v503
        %v520 = vsel %vm440, %v333, %v504
        %v521 = vsel %vm441, %v335, %v505
        %v522 = vsel %vm442, %v422, %v506
        %v523 = vsel %vm443, %v424, %v507
        %v524 = vsel %vm444, %v339, %v508
        %v525 = vsel %vm445, %v341, %v509
        %v526 = vsel %vm446, %v428, %v510
        %v527 = vsel %vm447, %v430, %v511
        %v528 = vmul.f32 %v512, 1.050701
        %v529 = vmul.f32 %v513, 1.050701
        %v530 = vmul.f32 %v514, 1.050701
        %v531 = vmul.f32 %v515, 1.050701
        %v532 = vmul.f32 %v516, 1.050701
        %v533 = vmul.f32 %v517, 1.050701
        %v534 = vmul.f32 %v518, 1.050701
        %v535 = vmul.f32 %v519, 1.050701
        %v536 = vmul.f32 %v520, 1.050701
        %v537 = vmul.f32 %v521, 1.050701
        %v538 = vmul.f32 %v522, 1.050701
        %v539 = vmul.f32 %v523, 1.050701
        %v540 = vmul.f32 %v524, 1.050701
        %v541 = vmul.f32 %v525, 1.050701
        %v542 = vmul.f32 %v526, 1.050701
        %v543 = vmul.f32 %v527, 1.050701
        %v544 = vld [vmem:[%s1 + $0x20] sm:$0xff]
        %v545 = vld [vmem:[%s1 + $0x28] sm:$0xff]
        %v546 = vld [vmem:[%s1 + $0x30] sm:$0xff]
        %v547 = vld [vmem:[%s1 + $0x38] sm:$0xff]
        %v548 = vld [vmem:[%s2 + $0x20] sm:$0xff]
        %v549 = vld [vmem:[%s2 + $0x28] sm:$0xff]
        %v550 = vld [vmem:[%s2 + $0x30] sm:$0xff]
        %v551 = vld [vmem:[%s2 + $0x38] sm:$0xff]
        %553 = vset.pattern.permute.xlu0 0
        %554 = vperm.xlu0 %553, %v548
        %v555 = vpop.permute.xlu0 %554
        %558 = vset.pattern.permute.xlu0 0
        %559 = vperm.xlu0 %558, %v549
        %v560 = vpop.permute.xlu0 %559
        %563 = vset.pattern.permute.xlu0 0
        %564 = vperm.xlu0 %563, %v550
        %v565 = vpop.permute.xlu0 %564
        %568 = vset.pattern.permute.xlu0 0
        %569 = vperm.xlu0 %568, %v551
        %v570 = vpop.permute.xlu0 %569
        %vm572 = vcmask 261120
        %v574 = vsel %vm572, %v544, 0
        %v577 = vsel %vm572, %v545, 0
        %v580 = vsel %vm572, %v546, 0
        %v583 = vsel %vm572, %v547, 0
        %585 = vmatprep.subr.mxu0 0.0
        %586 = vmatpush1.msra.mxu0 0.0
        %587 = vmatprep.subr.mxu0 0.0
        %588 = vmatpush1.msra.mxu0 0.0
        %589 = vmatprep.subr.mxu0 0.0
        %590 = vmatpush1.msra.mxu0 0.0
        %591 = vmatprep.subr.mxu0 0.0
        %592 = vmatpush1.msra.mxu0 0.0
        %593 = vmatprep.subr.mxu0 0.0
        %594 = vmatpush1.msra.mxu0 0.0
        %595 = vmatprep.subr.mxu0 0.0
        %596 = vmatpush1.msra.mxu0 0.0
        %597 = vmatprep.subr.mxu0 0.0
        %598 = vmatpush1.msra.mxu0 0.0
        %599 = vmatprep.subr.mxu0 0.0
        %600 = vmatpush1.msra.mxu0 0.0
        %601 = vmatprep.subr.mxu0 0.0
        %602 = vmatpush1.msra.mxu0 0.0
        %603 = vmatprep.subr.mxu0 0.0
        %604 = vmatpush1.msra.mxu0 0.0
        %605 = vmatprep.subr.mxu0 0.0
        %606 = vmatpush1.msra.mxu0 0.0
        %607 = vmatprep.subr.mxu0 0.0
        %608 = vmatpush1.msra.mxu0 0.0
        %609 = vmatprep.subr.mxu0 %v541
        %610 = vmatpush1.msra.mxu0 %v540
        %611 = vmatprep.subr.mxu0 %v537
        %612 = vmatpush1.msra.mxu0 %v536
        %613 = vmatprep.subr.mxu0 %v533
        %614 = vmatpush1.msra.mxu0 %v532
        %615 = vmatprep.subr.mxu0 %v529
        %616 = vmatpush1.msra.mxu0 %v528
        %617 = vmatprep.subr.mxu0 0.0
        %618 = vmatpush2.msra.mxu0 0.0
        %619 = vmatprep.subr.mxu0 0.0
        %620 = vmatpush2.msra.mxu0 0.0
        %621 = vmatprep.subr.mxu0 0.0
        %622 = vmatpush2.msra.mxu0 0.0
        %623 = vmatprep.subr.mxu0 0.0
        %624 = vmatpush2.msra.mxu0 0.0
        %625 = vmatprep.subr.mxu0 0.0
        %626 = vmatpush2.msra.mxu0 0.0
        %627 = vmatprep.subr.mxu0 0.0
        %628 = vmatpush2.msra.mxu0 0.0
        %629 = vmatprep.subr.mxu0 0.0
        %630 = vmatpush2.msra.mxu0 0.0
        %631 = vmatprep.subr.mxu0 0.0
        %632 = vmatpush2.msra.mxu0 0.0
        %633 = vmatprep.subr.mxu0 0.0
        %634 = vmatpush2.msra.mxu0 0.0
        %635 = vmatprep.subr.mxu0 0.0
        %636 = vmatpush2.msra.mxu0 0.0
        %637 = vmatprep.subr.mxu0 0.0
        %638 = vmatpush2.msra.mxu0 0.0
        %639 = vmatprep.subr.mxu0 0.0
        %640 = vmatpush2.msra.mxu0 0.0
        %641 = vmatprep.subr.mxu0 0.0
        %642 = vmatpush2.msra.mxu0 0.0
        %643 = vmatprep.subr.mxu0 0.0
        %644 = vmatpush2.msra.mxu0 0.0
        %645 = vmatprep.subr.mxu0 0.0
        %646 = vmatpush2.msra.mxu0 0.0
        %647 = vmatprep.subr.mxu0 0.0
        %648 = vmatpush2.msra.mxu0 0.0
        %649 = vmatprep.mubr.f32.mxu0 0.0
        %650 = vmatmul.mubr.f32.gmra.mxu0 %v574
        %v651 = vpop.f32.mrf.mxu0
        %v652 = vadd.f32 %v555, %v651
        %v653 = vpop.f32.mrf.mxu0
        %v654 = vadd.f32 %v555, %v653
        %655 = vmatprep.mubr.f32.mxu0 0.0
        %656 = vmatmul.mubr.f32.gmra.mxu0 %v577
        %v657 = vpop.f32.mrf.mxu0
        %v658 = vadd.f32 %v560, %v657
        %v659 = vpop.f32.mrf.mxu0
        %v660 = vadd.f32 %v560, %v659
        %661 = vmatprep.mubr.f32.mxu0 0.0
        %662 = vmatmul.mubr.f32.gmra.mxu0 %v580
        %v663 = vpop.f32.mrf.mxu0
        %v664 = vadd.f32 %v565, %v663
        %v665 = vpop.f32.mrf.mxu0
        %v666 = vadd.f32 %v565, %v665
        %667 = vmatprep.mubr.f32.mxu0 0.0
        %668 = vmatmul.mubr.f32.gmra.mxu0 %v583
        %v669 = vpop.f32.mrf.mxu0
        %v670 = vadd.f32 %v570, %v669
        %v671 = vpop.f32.mrf.mxu0
        %v672 = vadd.f32 %v570, %v671
        %673 = vdwg.mxu0
        %674 = vmatprep.subr.mxu0 0.0
        %675 = vmatpush1.msra.mxu0 0.0
        %676 = vmatprep.subr.mxu0 0.0
        %677 = vmatpush1.msra.mxu0 0.0
        %678 = vmatprep.subr.mxu0 0.0
        %679 = vmatpush1.msra.mxu0 0.0
        %680 = vmatprep.subr.mxu0 0.0
        %681 = vmatpush1.msra.mxu0 0.0
        %682 = vmatprep.subr.mxu0 0.0
        %683 = vmatpush1.msra.mxu0 0.0
        %684 = vmatprep.subr.mxu0 0.0
        %685 = vmatpush1.msra.mxu0 0.0
        %686 = vmatprep.subr.mxu0 0.0
        %687 = vmatpush1.msra.mxu0 0.0
        %688 = vmatprep.subr.mxu0 0.0
        %689 = vmatpush1.msra.mxu0 0.0
        %690 = vmatprep.subr.mxu0 0.0
        %691 = vmatpush1.msra.mxu0 0.0
        %692 = vmatprep.subr.mxu0 0.0
        %693 = vmatpush1.msra.mxu0 0.0
        %694 = vmatprep.subr.mxu0 0.0
        %695 = vmatpush1.msra.mxu0 0.0
        %696 = vmatprep.subr.mxu0 0.0
        %697 = vmatpush1.msra.mxu0 0.0
        %698 = vmatprep.subr.mxu0 %v543
        %699 = vmatpush1.msra.mxu0 %v542
        %700 = vmatprep.subr.mxu0 %v539
        %701 = vmatpush1.msra.mxu0 %v538
        %702 = vmatprep.subr.mxu0 %v535
        %703 = vmatpush1.msra.mxu0 %v534
        %704 = vmatprep.subr.mxu0 %v531
        %705 = vmatpush1.msra.mxu0 %v530
        %706 = vmatprep.subr.mxu0 0.0
        %707 = vmatpush2.msra.mxu0 0.0
        %708 = vmatprep.subr.mxu0 0.0
        %709 = vmatpush2.msra.mxu0 0.0
        %710 = vmatprep.subr.mxu0 0.0
        %711 = vmatpush2.msra.mxu0 0.0
        %712 = vmatprep.subr.mxu0 0.0
        %713 = vmatpush2.msra.mxu0 0.0
        %714 = vmatprep.subr.mxu0 0.0
        %715 = vmatpush2.msra.mxu0 0.0
        %716 = vmatprep.subr.mxu0 0.0
        %717 = vmatpush2.msra.mxu0 0.0
        %718 = vmatprep.subr.mxu0 0.0
        %719 = vmatpush2.msra.mxu0 0.0
        %720 = vmatprep.subr.mxu0 0.0
        %721 = vmatpush2.msra.mxu0 0.0
        %722 = vmatprep.subr.mxu0 0.0
        %723 = vmatpush2.msra.mxu0 0.0
        %724 = vmatprep.subr.mxu0 0.0
        %725 = vmatpush2.msra.mxu0 0.0
        %726 = vmatprep.subr.mxu0 0.0
        %727 = vmatpush2.msra.mxu0 0.0
        %728 = vmatprep.subr.mxu0 0.0
        %729 = vmatpush2.msra.mxu0 0.0
        %730 = vmatprep.subr.mxu0 0.0
        %731 = vmatpush2.msra.mxu0 0.0
        %732 = vmatprep.subr.mxu0 0.0
        %733 = vmatpush2.msra.mxu0 0.0
        %734 = vmatprep.subr.mxu0 0.0
        %735 = vmatpush2.msra.mxu0 0.0
        %736 = vmatprep.subr.mxu0 0.0
        %737 = vmatpush2.msra.mxu0 0.0
        %738 = vmatprep.mubr.f32.mxu0 0.0
        %739 = vmatmul.mubr.f32.gmra.mxu0 %v574
        %v740 = vpop.f32.mrf.mxu0
        %v741 = vadd.f32 %v555, %v740
        %v742 = vpop.f32.mrf.mxu0
        %v743 = vadd.f32 %v555, %v742
        %744 = vmatprep.mubr.f32.mxu0 0.0
        %745 = vmatmul.mubr.f32.gmra.mxu0 %v577
        %v746 = vpop.f32.mrf.mxu0
        %v747 = vadd.f32 %v560, %v746
        %v748 = vpop.f32.mrf.mxu0
        %v749 = vadd.f32 %v560, %v748
        %750 = vmatprep.mubr.f32.mxu0 0.0
        %751 = vmatmul.mubr.f32.gmra.mxu0 %v580
        %v752 = vpop.f32.mrf.mxu0
        %v753 = vadd.f32 %v565, %v752
        %v754 = vpop.f32.mrf.mxu0
        %v755 = vadd.f32 %v565, %v754
        %756 = vmatprep.mubr.f32.mxu0 0.0
        %757 = vmatmul.mubr.f32.gmra.mxu0 %v583
        %v758 = vpop.f32.mrf.mxu0
        %v759 = vadd.f32 %v570, %v758
        %v760 = vpop.f32.mrf.mxu0
        %v761 = vadd.f32 %v570, %v760
        %762 = vdwg.mxu0
        %vm763 = vcmp.gt.f32.partialorder %v652, 0.0
        %vm764 = vcmp.gt.f32.partialorder %v654, 0.0
        %vm765 = vcmp.gt.f32.partialorder %v741, 0.0
        %vm766 = vcmp.gt.f32.partialorder %v743, 0.0
        %vm767 = vcmp.gt.f32.partialorder %v658, 0.0
        %vm768 = vcmp.gt.f32.partialorder %v660, 0.0
        %vm769 = vcmp.gt.f32.partialorder %v747, 0.0
        %vm770 = vcmp.gt.f32.partialorder %v749, 0.0
        %vm771 = vcmp.gt.f32.partialorder %v664, 0.0
        %vm772 = vcmp.gt.f32.partialorder %v666, 0.0
        %vm773 = vcmp.gt.f32.partialorder %v753, 0.0
        %vm774 = vcmp.gt.f32.partialorder %v755, 0.0
        %vm775 = vcmp.gt.f32.partialorder %v670, 0.0
        %vm776 = vcmp.gt.f32.partialorder %v672, 0.0
        %vm777 = vcmp.gt.f32.partialorder %v759, 0.0
        %vm778 = vcmp.gt.f32.partialorder %v761, 0.0
        %v779 = vmul.f32 %v652, 1.442695
        %v780 = vpow.pop %v779
        %v781 = vmul.f32 %v654, 1.442695
        %v782 = vpow.pop %v781
        %v783 = vmul.f32 %v741, 1.442695
        %v784 = vpow.pop %v783
        %v785 = vmul.f32 %v743, 1.442695
        %v786 = vpow.pop %v785
        %v787 = vmul.f32 %v658, 1.442695
        %v788 = vpow.pop %v787
        %v789 = vmul.f32 %v660, 1.442695
        %v790 = vpow.pop %v789
        %v791 = vmul.f32 %v747, 1.442695
        %v792 = vpow.pop %v791
        %v793 = vmul.f32 %v749, 1.442695
        %v794 = vpow.pop %v793
        %v795 = vmul.f32 %v664, 1.442695
        %v796 = vpow.pop %v795
        %v797 = vmul.f32 %v666, 1.442695
        %v798 = vpow.pop %v797
        %v799 = vmul.f32 %v753, 1.442695
        %v800 = vpow.pop %v799
        %v801 = vmul.f32 %v755, 1.442695
        %v802 = vpow.pop %v801
        %v803 = vmul.f32 %v670, 1.442695
        %v804 = vpow.pop %v803
        %v805 = vmul.f32 %v672, 1.442695
        %v806 = vpow.pop %v805
        %v807 = vmul.f32 %v759, 1.442695
        %v808 = vpow.pop %v807
        %v809 = vmul.f32 %v761, 1.442695
        %v810 = vpow.pop %v809
        %v811 = vsub.f32 %v780, 1.0
        %v812 = vsub.f32 %v782, 1.0
        %v813 = vsub.f32 %v784, 1.0
        %v814 = vsub.f32 %v786, 1.0
        %v815 = vsub.f32 %v788, 1.0
        %v816 = vsub.f32 %v790, 1.0
        %v817 = vsub.f32 %v792, 1.0
        %v818 = vsub.f32 %v794, 1.0
        %v819 = vsub.f32 %v796, 1.0
        %v820 = vsub.f32 %v798, 1.0
        %v821 = vsub.f32 %v800, 1.0
        %v822 = vsub.f32 %v802, 1.0
        %v823 = vsub.f32 %v804, 1.0
        %v824 = vsub.f32 %v806, 1.0
        %v825 = vsub.f32 %v808, 1.0
        %v826 = vsub.f32 %v810, 1.0
        %v827 = vmul.f32 %v811, 1.6732632
        %v828 = vmul.f32 %v812, 1.6732632
        %v829 = vmul.f32 %v813, 1.6732632
        %v830 = vmul.f32 %v814, 1.6732632
        %v831 = vmul.f32 %v815, 1.6732632
        %v832 = vmul.f32 %v816, 1.6732632
        %v833 = vmul.f32 %v817, 1.6732632
        %v834 = vmul.f32 %v818, 1.6732632
        %v835 = vmul.f32 %v819, 1.6732632
        %v836 = vmul.f32 %v820, 1.6732632
        %v837 = vmul.f32 %v821, 1.6732632
        %v838 = vmul.f32 %v822, 1.6732632
        %v839 = vmul.f32 %v823, 1.6732632
        %v840 = vmul.f32 %v824, 1.6732632
        %v841 = vmul.f32 %v825, 1.6732632
        %v842 = vmul.f32 %v826, 1.6732632
        %v843 = vsel %vm763, %v652, %v827
        %v844 = vsel %vm764, %v654, %v828
        %v845 = vsel %vm765, %v741, %v829
        %v846 = vsel %vm766, %v743, %v830
        %v847 = vsel %vm767, %v658, %v831
        %v848 = vsel %vm768, %v660, %v832
        %v849 = vsel %vm769, %v747, %v833
        %v850 = vsel %vm770, %v749, %v834
        %v851 = vsel %vm771, %v664, %v835
        %v852 = vsel %vm772, %v666, %v836
        %v853 = vsel %vm773, %v753, %v837
        %v854 = vsel %vm774, %v755, %v838
        %v855 = vsel %vm775, %v670, %v839
        %v856 = vsel %vm776, %v672, %v840
        %v857 = vsel %vm777, %v759, %v841
        %v858 = vsel %vm778, %v761, %v842
        %v859 = vmul.f32 %v843, 1.050701
        %v860 = vmul.f32 %v844, 1.050701
        %v861 = vmul.f32 %v845, 1.050701
        %v862 = vmul.f32 %v846, 1.050701
        %v863 = vmul.f32 %v847, 1.050701
        %v864 = vmul.f32 %v848, 1.050701
        %v865 = vmul.f32 %v849, 1.050701
        %v866 = vmul.f32 %v850, 1.050701
        %v867 = vmul.f32 %v851, 1.050701
        %v868 = vmul.f32 %v852, 1.050701
        %v869 = vmul.f32 %v853, 1.050701
        %v870 = vmul.f32 %v854, 1.050701
        %v871 = vmul.f32 %v855, 1.050701
        %v872 = vmul.f32 %v856, 1.050701
        %v873 = vmul.f32 %v857, 1.050701
        %v874 = vmul.f32 %v858, 1.050701
        %v875 = vld [vmem:[%s1 + $0x40] sm:$0xff]
        %v876 = vld [vmem:[%s1 + $0x48] sm:$0xff]
        %v877 = vld [vmem:[%s2 + $0x40] sm:$0xff]
        %v878 = vld [vmem:[%s2 + $0x48] sm:$0xff]
        %880 = vset.pattern.permute.xlu0 0
        %881 = vperm.xlu0 %880, %v877
        %v882 = vpop.permute.xlu0 %881
        %885 = vset.pattern.permute.xlu0 0
        %886 = vperm.xlu0 %885, %v878
        %v887 = vpop.permute.xlu0 %886
        %v889 = vsel %vm572, %v875, 0
        %v892 = vsel %vm572, %v876, 0
        %894 = vmatprep.subr.mxu0 0.0
        %895 = vmatpush1.msra.mxu0 0.0
        %896 = vmatprep.subr.mxu0 0.0
        %897 = vmatpush1.msra.mxu0 0.0
        %898 = vmatprep.subr.mxu0 0.0
        %899 = vmatpush1.msra.mxu0 0.0
        %900 = vmatprep.subr.mxu0 0.0
        %901 = vmatpush1.msra.mxu0 0.0
        %902 = vmatprep.subr.mxu0 0.0
        %903 = vmatpush1.msra.mxu0 0.0
        %904 = vmatprep.subr.mxu0 0.0
        %905 = vmatpush1.msra.mxu0 0.0
        %906 = vmatprep.subr.mxu0 0.0
        %907 = vmatpush1.msra.mxu0 0.0
        %908 = vmatprep.subr.mxu0 0.0
        %909 = vmatpush1.msra.mxu0 0.0
        %910 = vmatprep.subr.mxu0 0.0
        %911 = vmatpush1.msra.mxu0 0.0
        %912 = vmatprep.subr.mxu0 0.0
        %913 = vmatpush1.msra.mxu0 0.0
        %914 = vmatprep.subr.mxu0 0.0
        %915 = vmatpush1.msra.mxu0 0.0
        %916 = vmatprep.subr.mxu0 0.0
        %917 = vmatpush1.msra.mxu0 0.0
        %918 = vmatprep.subr.mxu0 %v872
        %919 = vmatpush1.msra.mxu0 %v871
        %920 = vmatprep.subr.mxu0 %v868
        %921 = vmatpush1.msra.mxu0 %v867
        %922 = vmatprep.subr.mxu0 %v864
        %923 = vmatpush1.msra.mxu0 %v863
        %924 = vmatprep.subr.mxu0 %v860
        %925 = vmatpush1.msra.mxu0 %v859
        %926 = vmatprep.subr.mxu0 0.0
        %927 = vmatpush2.msra.mxu0 0.0
        %928 = vmatprep.subr.mxu0 0.0
        %929 = vmatpush2.msra.mxu0 0.0
        %930 = vmatprep.subr.mxu0 0.0
        %931 = vmatpush2.msra.mxu0 0.0
        %932 = vmatprep.subr.mxu0 0.0
        %933 = vmatpush2.msra.mxu0 0.0
        %934 = vmatprep.subr.mxu0 0.0
        %935 = vmatpush2.msra.mxu0 0.0
        %936 = vmatprep.subr.mxu0 0.0
        %937 = vmatpush2.msra.mxu0 0.0
        %938 = vmatprep.subr.mxu0 0.0
        %939 = vmatpush2.msra.mxu0 0.0
        %940 = vmatprep.subr.mxu0 0.0
        %941 = vmatpush2.msra.mxu0 0.0
        %942 = vmatprep.subr.mxu0 0.0
        %943 = vmatpush2.msra.mxu0 0.0
        %944 = vmatprep.subr.mxu0 0.0
        %945 = vmatpush2.msra.mxu0 0.0
        %946 = vmatprep.subr.mxu0 0.0
        %947 = vmatpush2.msra.mxu0 0.0
        %948 = vmatprep.subr.mxu0 0.0
        %949 = vmatpush2.msra.mxu0 0.0
        %950 = vmatprep.subr.mxu0 0.0
        %951 = vmatpush2.msra.mxu0 0.0
        %952 = vmatprep.subr.mxu0 0.0
        %953 = vmatpush2.msra.mxu0 0.0
        %954 = vmatprep.subr.mxu0 0.0
        %955 = vmatpush2.msra.mxu0 0.0
        %956 = vmatprep.subr.mxu0 0.0
        %957 = vmatpush2.msra.mxu0 0.0
        %958 = vmatprep.mubr.f32.mxu0 0.0
        %959 = vmatmul.mubr.f32.gmra.mxu0 %v889
        %v960 = vpop.f32.mrf.mxu0
        %v961 = vadd.f32 %v882, %v960
        %v962 = vpop.f32.mrf.mxu0
        %v963 = vadd.f32 %v882, %v962
        %964 = vmatprep.mubr.f32.mxu0 0.0
        %965 = vmatmul.mubr.f32.gmra.mxu0 %v892
        %v966 = vpop.f32.mrf.mxu0
        %v967 = vpop.f32.mrf.mxu0
        %968 = vdwg.mxu0
        %969 = vmatprep.subr.mxu0 0.0
        %970 = vmatpush1.msra.mxu0 0.0
        %971 = vmatprep.subr.mxu0 0.0
        %972 = vmatpush1.msra.mxu0 0.0
        %973 = vmatprep.subr.mxu0 0.0
        %974 = vmatpush1.msra.mxu0 0.0
        %975 = vmatprep.subr.mxu0 0.0
        %976 = vmatpush1.msra.mxu0 0.0
        %977 = vmatprep.subr.mxu0 0.0
        %978 = vmatpush1.msra.mxu0 0.0
        %979 = vmatprep.subr.mxu0 0.0
        %980 = vmatpush1.msra.mxu0 0.0
        %981 = vmatprep.subr.mxu0 0.0
        %982 = vmatpush1.msra.mxu0 0.0
        %983 = vmatprep.subr.mxu0 0.0
        %984 = vmatpush1.msra.mxu0 0.0
        %985 = vmatprep.subr.mxu0 0.0
        %986 = vmatpush1.msra.mxu0 0.0
        %987 = vmatprep.subr.mxu0 0.0
        %988 = vmatpush1.msra.mxu0 0.0
        %989 = vmatprep.subr.mxu0 0.0
        %990 = vmatpush1.msra.mxu0 0.0
        %991 = vmatprep.subr.mxu0 0.0
        %992 = vmatpush1.msra.mxu0 0.0
        %993 = vmatprep.subr.mxu0 %v874
        %994 = vmatpush1.msra.mxu0 %v873
        %995 = vmatprep.subr.mxu0 %v870
        %996 = vmatpush1.msra.mxu0 %v869
        %997 = vmatprep.subr.mxu0 %v866
        %998 = vmatpush1.msra.mxu0 %v865
        %999 = vmatprep.subr.mxu0 %v862
        %1000 = vmatpush1.msra.mxu0 %v861
        %1001 = vmatprep.subr.mxu0 0.0
        %1002 = vmatpush2.msra.mxu0 0.0
        %1003 = vmatprep.subr.mxu0 0.0
        %1004 = vmatpush2.msra.mxu0 0.0
        %1005 = vmatprep.subr.mxu0 0.0
        %1006 = vmatpush2.msra.mxu0 0.0
        %1007 = vmatprep.subr.mxu0 0.0
        %1008 = vmatpush2.msra.mxu0 0.0
        %1009 = vmatprep.subr.mxu0 0.0
        %1010 = vmatpush2.msra.mxu0 0.0
        %1011 = vmatprep.subr.mxu0 0.0
        %1012 = vmatpush2.msra.mxu0 0.0
        %1013 = vmatprep.subr.mxu0 0.0
        %1014 = vmatpush2.msra.mxu0 0.0
        %1015 = vmatprep.subr.mxu0 0.0
        %1016 = vmatpush2.msra.mxu0 0.0
        %1017 = vmatprep.subr.mxu0 0.0
        %1018 = vmatpush2.msra.mxu0 0.0
        %1019 = vmatprep.subr.mxu0 0.0
        %1020 = vmatpush2.msra.mxu0 0.0
        %1021 = vmatprep.subr.mxu0 0.0
        %1022 = vmatpush2.msra.mxu0 0.0
        %1023 = vmatprep.subr.mxu0 0.0
        %1024 = vmatpush2.msra.mxu0 0.0
        %1025 = vmatprep.subr.mxu0 0.0
        %1026 = vmatpush2.msra.mxu0 0.0
        %1027 = vmatprep.subr.mxu0 0.0
        %1028 = vmatpush2.msra.mxu0 0.0
        %1029 = vmatprep.subr.mxu0 0.0
        %1030 = vmatpush2.msra.mxu0 0.0
        %1031 = vmatprep.subr.mxu0 0.0
        %1032 = vmatpush2.msra.mxu0 0.0
        %1033 = vmatprep.mubr.f32.mxu0 0.0
        %1034 = vmatmul.mubr.f32.gmra.mxu0 %v889
        %v1035 = vpop.f32.mrf.mxu0
        %v1036 = vadd.f32 %v882, %v1035
        %v1037 = vpop.f32.mrf.mxu0
        %v1038 = vadd.f32 %v882, %v1037
        %1039 = vmatprep.mubr.f32.mxu0 0.0
        %1040 = vmatmul.mubr.f32.gmra.mxu0 %v892
        %v1041 = vpop.f32.mrf.mxu0
        %v1042 = vpop.f32.mrf.mxu0
        %1043 = vdwg.mxu0
        %vm1044 = vcmp.gt.f32.partialorder %v961, 0.0
        %vm1045 = vcmp.gt.f32.partialorder %v963, 0.0
        %vm1046 = vcmp.gt.f32.partialorder %v1036, 0.0
        %vm1047 = vcmp.gt.f32.partialorder %v1038, 0.0
        %v1048 = vmul.f32 %v961, 1.442695
        %v1049 = vpow.pop %v1048
        %v1050 = vmul.f32 %v963, 1.442695
        %v1051 = vpow.pop %v1050
        %v1052 = vmul.f32 %v1036, 1.442695
        %v1053 = vpow.pop %v1052
        %v1054 = vmul.f32 %v1038, 1.442695
        %v1055 = vpow.pop %v1054
        %v1056 = vsub.f32 %v1049, 1.0
        %v1057 = vsub.f32 %v1051, 1.0
        %v1058 = vsub.f32 %v1053, 1.0
        %v1059 = vsub.f32 %v1055, 1.0
        %v1060 = vmul.f32 %v1056, 1.6732632
        %v1061 = vmul.f32 %v1057, 1.6732632
        %v1062 = vmul.f32 %v1058, 1.6732632
        %v1063 = vmul.f32 %v1059, 1.6732632
        %v1064 = vsel %vm1044, %v961, %v1060
        %v1065 = vsel %vm1045, %v963, %v1061
        %v1066 = vsel %vm1046, %v1036, %v1062
        %v1067 = vsel %vm1047, %v1038, %v1063
        %v1068 = vmul.f32 %v1064, 1.050701
        %v1069 = vmul.f32 %v1065, 1.050701
        %v1070 = vmul.f32 %v1066, 1.050701
        %v1071 = vmul.f32 %v1067, 1.050701
        %v1076 = vcombine.low %v1068, %v1069
        %v1077 = vcombine.low %v1070, %v1071
        %v1079 = vunpack.c.l.s4 1966171168
        %v1080 = vunpack.c.0.s8 %v1079
        %v1081 = vlaneseq
        %v1082 = vshrl.u32 %v1081, 7
        %v1083 = vsub.s32 %v1080, %v1082
        %v1084 = vrot.slane %v1076, %v1083
        %v1086 = vunpack.c.l.s4 1966171168
        %v1087 = vunpack.c.0.s8 %v1086
        %v1088 = vlaneseq
        %v1089 = vshrl.u32 %v1088, 7
        %v1090 = vsub.s32 %v1087, %v1089
        %v1091 = vrot.slane %v1077, %v1090
        %v1092 = vcombine.low %v1084, %v1091
        %v1094 = vunpack.c.l.s4 1966171168
        %v1095 = vunpack.c.0.s8 %v1094
        %v1096 = vlaneseq
        %v1097 = vshrl.u32 %v1096, 7
        %v1098 = vsub.s32 %v1095, %v1097
        %v1099 = vrot.slane %v1092, %v1098
        %v1101 = vlaneseq
        %vm1102 = vcmp.ge.s32.totalorder %v1101, 0
        %vm1103 = vcmp.lt.s32.totalorder %v1101, 512
        %vm1104 = vmand %vm1102, %vm1103
        %1105 = vst.msk [vmem:[%s202] sm:$0xf] %vm1104, %v1099
        %s1106 = sand.u32 %s93, 1
        %s1107 = scalar_lea.sflag [#allocation4], %s1106
        %s1108 = sand.u32 %s93, 1
        %s1109 = smul.addr %s1108, 4
        %s1110 = scalar_lea.vmem [#allocation3], %s1109
        // Predicated region
        $region56: #{tpu_custom_call.1} parent=50 // pred_check
          %p1111 = pneg %p103
        $region57: #{tpu_custom_call.1} parent=50 // pred_check_branch
          %1113 = sbr.rel (%p1111) target = $region59
        $region58: #{tpu_custom_call.1} parent=50 // pred_region
          %s1114 = smul.u32 4, %s17
          %s1116 = ssub.s32 64, 64
          %1117 = vsyncadd %s1107, %s1116
          %s1118 = smul.addr %s1114, 16
          %s1119 = scalar_lea.hbm %s3, %s1118
          %s1121 = sshll.u32 %s1110, 4
          %s1122 = int_to_ptr.vmem [resolvable:$true] %s1121
          %1124 = dma.vmem_to_hbm [thread:$0]  %s1122, 64, %s1119, %s1107
        $region59: #{tpu_custom_call.1} parent=50 // pred_fallthru
          _
      $region51: #{tpu_custom_call.1} parent=5 // pred_fallthru
        _
      %p1125 = scmp.le.s32.totalorder 2, %s12
      // Predicated region
      $region60: #{tpu_custom_call.1} parent=5 // pred_check
        %p1126 = pneg %p1125
      $region61: #{tpu_custom_call.1} parent=5 // pred_check_branch
        %1128 = sbr.rel (%p1126) target = $region63
      $region62: #{tpu_custom_call.1} parent=5 // pred_region
        %s1129 = ssub.s32 %s12, 2
        // Predicated region
        $region64: #{tpu_custom_call.1} parent=62 // pred_check
          %p1130 = pneg %p109
        $region65: #{tpu_custom_call.1} parent=62 // pred_check_branch
          %1132 = sbr.rel (%p1130) target = $region67
        $region66: #{tpu_custom_call.1} parent=62 // pred_region
          %s1133 = sand.u32 %s94, 1
          %s1134 = scalar_lea.sflag [#allocation4], %s1133
          %s1135 = sand.u32 %s94, 1
          %s1136 = smul.addr %s1135, 4
          %s1137 = scalar_lea.vmem [#allocation3], %s1136
          %1138 = dma.done %s1134, 64
        $region67: #{tpu_custom_call.1} parent=62 // pred_fallthru
          _
      $region63: #{tpu_custom_call.1} parent=5 // pred_fallthru
        _
    $region6: #{tpu_custom_call.1} parent=1 // loop_footer
      %s16 = sadd.s32 1, %s12
    $region7: #{tpu_custom_call.1} parent=1 // loop_footer_branch
      %11 = sbr.rel target = $region3
    $region8: #{tpu_custom_call.1} parent=1 // loop_exit
      _
    %1139 = vsyncpa [#allocation4], 1
    %s1140 = scalar_lea.sflag [#allocation4], 1
    %1141 = vsyncpa %s1140, 1

</llo_original>
